<compile_context>
chip_gen: v5e
topology: v5e:2x2
jax: 0.10.0
libtpu: 0.0.40
codegen_flags: <defaults>
</compile_context>

<pallas_src>
import functools

import jax
import jax.numpy as jnp
from jax.experimental import pallas as pl
from jax.experimental.pallas import tpu as pltpu


def _tcn_block_kernel(xa_ref, xh_ref, w_dw_ref, dw_shift_ref,
                      w_pw_ref, pw_shift_ref, w_c2_ref, c2_shift_ref,
                      o_ref, xw_ref, *, kernel_size, dilation, t_tile,
                      res_offset, add_residual, use_mxu):
    # Stitch the main (C_in, tt) tile and its (C_in, rf_pad) halo into one
    # contiguous VMEM window so the K dilated tap slices below are simple
    # (possibly lane-shifted) loads.  Stores are at 128-aligned lane offsets.
    xw_ref[:, :t_tile] = xa_ref[...]
    xw_ref[:, t_tile:] = xh_ref[...]

    # ---- depthwise dilated conv (groups = C_in, no padding), f32 accum ----
    # BN1 scale is pre-folded into w_dw; bias + BN1 shift live in dw_shift.
    # Accumulator is initialised from tap 0 (no zeros + add).
    acc = xw_ref[:, :t_tile].astype(jnp.float32) * w_dw_ref[:, 0:1]
    for j in range(1, kernel_size):                       # static tap loop
        s = j * dilation
        acc = acc + (xw_ref[:, s:s + t_tile].astype(jnp.float32)
                     * w_dw_ref[:, j:j + 1])
    h = jnp.maximum(acc + dw_shift_ref[...], 0.0)          # (C_in, tt)

    # ---- pointwise 1x1 (+ folded BN2ds) + ReLU, then conv2 1x1 (+ BN2) ----
    if use_mxu:
        mm = w_pw_ref.dtype
        h = jnp.dot(w_pw_ref[...], h.astype(mm),
                    preferred_element_type=jnp.float32)    # (C_res, tt)
        h = jnp.maximum(h + pw_shift_ref[...], 0.0)
        h = jnp.dot(w_c2_ref[...], h.astype(mm),
                    preferred_element_type=jnp.float32)
    else:
        # Tiny channel counts: unrolled per-channel broadcast-MAC on the VPU
        # (no f32->bf16 casts, no underfilled-MXU push/pop).
        def matvec(w_ref, v):
            w = w_ref[...].astype(jnp.float32)
            out = w[:, 0:1] * v[0:1, :]
            for c in range(1, v.shape[0]):
                out = out + w[:, c:c + 1] * v[c:c + 1, :]
            return out
        h = matvec(w_pw_ref, h)
        h = jnp.maximum(h + pw_shift_ref[...], 0.0)
        h = matvec(w_c2_ref, h)
    h = h + c2_shift_ref[...]

    # ---- residual add (only when in_channels == res_channels) + ReLU ----
    if add_residual:
        h = h + xw_ref[:, res_offset:res_offset + t_tile].astype(jnp.float32)
    o_ref[...] = jnp.maximum(h, 0.0).astype(o_ref.dtype)


def tcn_block_pallas(x_ncl, params, *, kernel_size, dilation, causal,
                     eps=1e-5, time_tile=2048, matmul_dtype=jnp.bfloat16,
                     out_dtype=None, pointwise_path="auto"):
    """x_ncl: (B, C_in, T), PyTorch NCL convention.  Returns (B, C_res, t_out).

    x may be float32 or bfloat16 -- the kernel streams HBM at x's dtype (pass
    bf16 to halve traffic); internal math is f32.  `out_dtype` defaults to
    x's dtype.  `pointwise_path` in {"auto","mxu","vpu"}.
    """
    B, C_in, T = x_ncl.shape
    rf = dilation * (kernel_size - 1)
    t_out = T - rf
    assert t_out > 0, "sequence shorter than receptive field"
    C_res = params["w_pw"].shape[0]
    add_residual = (C_in == C_res)
    if not causal and add_residual:
        assert rf % 2 == 0, "non-causal residual TCNBlock needs an even rf"
    res_offset = rf if causal else rf // 2
    out_dtype = x_ncl.dtype if out_dtype is None else out_dtype

    x_bytes = jnp.dtype(x_ncl.dtype).itemsize
    o_bytes = jnp.dtype(out_dtype).itemsize
    mm_bytes = jnp.dtype(matmul_dtype).itemsize

    # Halo width: smallest lane-aligned (multiple-of-128) cover of the
    # receptive field.  The time tile is a multiple of it so the halo of tile i
    # is a plain block index ((i+1) * halo_stride) -- pure block indexing,
    # fully auto-pipelined.
    rf_pad = ((max(rf, 1) + 127) // 128) * 128

    def round_tile(v):
        v = max(rf_pad, min(v, t_out))
        return ((v + rf_pad - 1) // rf_pad) * rf_pad       # multiple of 128

    tt = round_tile(time_tile)

    # Per-step VMEM estimate: double-buffered main/halo/output blocks +
    # stitch scratch + (double-buffered) weights.
    def step_bytes(tt_):
        w_b = (2 * 4 * (C_in * kernel_size + C_in + 2 * C_res)
               + 2 * mm_bytes * (C_res * C_in + C_res * C_res))
        return (2 * C_in * tt_ * x_bytes
                + 2 * C_in * rf_pad * x_bytes
                + 2 * C_res * tt_ * o_bytes
                + C_in * (tt_ + rf_pad) * x_bytes + w_b)

    budget = 28 << 20                      # fits v7x's 64 MiB VMEM with room
    while step_bytes(tt) > budget and tt > rf_pad:
        tt = round_tile(tt // 2)
    # v7x has 2 TensorCores: make sure the "parallel" grid has >= 2 steps.
    if B * (-(-t_out // tt)) < 2 and tt > rf_pad:
        tt_half = round_tile(tt // 2)
        if -(-t_out // tt_half) >= 2:
            tt = tt_half
    assert tt % rf_pad == 0
    nt = -(-t_out // tt)
    halo_stride = tt // rf_pad
    max_halo_blk = (T - 1) // rf_pad       # clamp keeps the halo block start
    # in bounds; a clamped/padded halo only ever feeds output columns >= t_out,
    # which the ragged final output block masks away.
    vmem_limit = int(min(max(2 * step_bytes(tt) + (4 << 20), 32 << 20),
                         60 << 20))

    if pointwise_path == "auto":
        use_mxu = max(C_in, C_res) > 16
    else:
        use_mxu = (pointwise_path == "mxu")

    # ---- fold eval-mode BatchNorm (+ conv bias) into the conv weights ----
    def fold(gamma, beta, mean, var):
        s = gamma / jnp.sqrt(var + eps)
        return s, beta - mean * s

    s1, t1 = fold(params["bn1_gamma"], params["bn1_beta"],
                  params["bn1_mean"], params["bn1_var"])
    s2, t2 = fold(params["bn2ds_gamma"], params["bn2ds_beta"],
                  params["bn2ds_mean"], params["bn2ds_var"])
    s3, t3 = fold(params["bn2_gamma"], params["bn2_beta"],
                  params["bn2_mean"], params["bn2_var"])

    w_dw_f = (params["w_dw"] * s1[:, None]).astype(jnp.float32)     # (C_in, K)
    dw_shift = (params["b_dw"] * s1 + t1)[:, None].astype(jnp.float32)
    w_pw_f = (params["w_pw"] * s2[:, None]).astype(matmul_dtype)    # (C_res, C_in)
    pw_shift = (params["b_pw"] * s2 + t2)[:, None].astype(jnp.float32)
    w_c2_f = (params["w_c2"] * s3[:, None]).astype(matmul_dtype)    # (C_res, C_res)
    c2_shift = (params["b_c2"] * s3 + t3)[:, None].astype(jnp.float32)

    kern = functools.partial(_tcn_block_kernel,
                             kernel_size=kernel_size, dilation=dilation,
                             t_tile=tt, res_offset=res_offset,
                             add_residual=add_residual, use_mxu=use_mxu)

    out = pl.pallas_call(
        kern,
        # Emit t_out directly; the final partial output block is masked, so no
        # wrapper-side slice copy is needed.
        out_shape=jax.ShapeDtypeStruct((B, C_res, t_out), out_dtype),
        grid=(B, nt),
        in_specs=[
            # main time tile of x
            pl.BlockSpec((None, C_in, tt), lambda b, i: (b, 0, i)),
            # receptive-field halo: first rf_pad columns of the next tile
            pl.BlockSpec((None, C_in, rf_pad),
                         lambda b, i: (b, 0, jnp.minimum(
                             (i + 1) * halo_stride, max_halo_blk))),
            pl.BlockSpec((C_in, kernel_size), lambda b, i: (0, 0)),
            pl.BlockSpec((C_in, 1), lambda b, i: (0, 0)),
            pl.BlockSpec((C_res, C_in), lambda b, i: (0, 0)),
            pl.BlockSpec((C_res, 1), lambda b, i: (0, 0)),
            pl.BlockSpec((C_res, C_res), lambda b, i: (0, 0)),
            pl.BlockSpec((C_res, 1), lambda b, i: (0, 0)),
        ],
        out_specs=pl.BlockSpec((None, C_res, tt), lambda b, i: (b, 0, i)),
        scratch_shapes=[pltpu.VMEM((C_in, tt + rf_pad), x_ncl.dtype)],
        compiler_params=pltpu.CompilerParams(
            dimension_semantics=("parallel", "parallel"),
            vmem_limit_bytes=vmem_limit),
    )(x_ncl, x_ncl, w_dw_f, dw_shift, w_pw_f, pw_shift, w_c2_f, c2_shift)

    return out


def tcn_block_ref(x_ncl, params, *, kernel_size, dilation, causal, eps=1e-5):
    """Pure-JAX f32 reference (unfolded BN), NCL in / NCL out."""
    B, C_in, T = x_ncl.shape
    rf = dilation * (kernel_size - 1)
    half = rf // 2
    t_out = T - rf
    C_res = params["w_pw"].shape[0]
    x = x_ncl.astype(jnp.float32)

    def bn(y, g, b, m, v):                    # y: (B, C, t), per-channel stats
        return ((y - m[:, None]) / jnp.sqrt(v[:, None] + eps)) * g[:, None] + b[:, None]

    y = jnp.zeros((B, C_in, t_out), jnp.float32)
    for j in range(kernel_size):
        y = y + (x[:, :, j * dilation:j * dilation + t_out]
                 * params["w_dw"][:, j][None, :, None])
    y = y + params["b_dw"][None, :, None]
    y = jnp.maximum(bn(y, params["bn1_gamma"], params["bn1_beta"],
                       params["bn1_mean"], params["bn1_var"]), 0.0)
    y = jnp.einsum("oc,bct->bot", params["w_pw"], y) + params["b_pw"][None, :, None]
    y = jnp.maximum(bn(y, params["bn2ds_gamma"], params["bn2ds_beta"],
                       params["bn2ds_mean"], params["bn2ds_var"]), 0.0)
    y = jnp.einsum("oc,bct->bot", params["w_c2"], y) + params["b_c2"][None, :, None]
    y = bn(y, params["bn2_gamma"], params["bn2_beta"],
           params["bn2_mean"], params["bn2_var"])
    off = rf if causal else half
    if C_in == C_res:
        y = y + x[:, :, off:off + t_out]
    return jnp.maximum(y, 0.0)


def make_params(key, c_in, c_res, kernel_size):
    ks = jax.random.split(key, 18)
    u = lambda k, s, lo, hi: jax.random.uniform(k, s, jnp.float32, lo, hi)
    return {
        # depthwise conv weight: PyTorch (C_in, 1, K) stored here as (C_in, K)
        "w_dw": u(ks[0], (c_in, kernel_size), -0.5, 0.5),
        "b_dw": u(ks[1], (c_in,), -0.1, 0.1),
        "bn1_gamma": u(ks[2], (c_in,), 0.8, 1.2),
        "bn1_beta": u(ks[3], (c_in,), -0.1, 0.1),
        "bn1_mean": u(ks[4], (c_in,), -0.2, 0.2),
        "bn1_var": u(ks[5], (c_in,), 0.5, 1.5),
        # pointwise weight: PyTorch (C_res, C_in, 1) stored as (C_res, C_in)
        "w_pw": u(ks[6], (c_res, c_in), -0.5, 0.5),
        "b_pw": u(ks[7], (c_res,), -0.1, 0.1),
        "bn2ds_gamma": u(ks[8], (c_res,), 0.8, 1.2),
        "bn2ds_beta": u(ks[9], (c_res,), -0.1, 0.1),
        "bn2ds_mean": u(ks[10], (c_res,), -0.2, 0.2),
        "bn2ds_var": u(ks[11], (c_res,), 0.5, 1.5),
        # conv2 weight: PyTorch (C_res, C_res, 1) stored as (C_res_out, C_res_in)
        "w_c2": u(ks[12], (c_res, c_res), -0.5, 0.5),
        "b_c2": u(ks[13], (c_res,), -0.1, 0.1),
        "bn2_gamma": u(ks[14], (c_res,), 0.8, 1.2),
        "bn2_beta": u(ks[15], (c_res,), -0.1, 0.1),
        "bn2_mean": u(ks[16], (c_res,), -0.2, 0.2),
        "bn2_var": u(ks[17], (c_res,), 0.5, 1.5),
    }


if __name__ == "__main__":
    key = jax.random.PRNGKey(0)

    configs = [
        # residual + causal, 3 time tiles, ragged final block (VPU 1x1 path)
        dict(B=2, c_in=8,  c_res=8,  k=3, dil=2, causal=True,  T=384, tile=128),
        # residual + non-causal (even rf), 2 time tiles (VPU 1x1 path)
        dict(B=2, c_in=16, c_res=16, k=5, dil=2, causal=False, T=256, tile=128),
        # no residual (C_in != C_res), single tile, halo clamp (MXU 1x1 path)
        dict(B=2, c_in=8,  c_res=24, k=3, dil=4, causal=True,  T=256, tile=256),
    ]

    # Strict checks: f32 everywhere, exact math vs pure-JAX reference.
    for cfg in configs:
        key, kx, kp = jax.random.split(key, 3)
        x = jax.random.normal(kx, (cfg["B"], cfg["c_in"], cfg["T"]), jnp.float32)
        params = make_params(kp, cfg["c_in"], cfg["c_res"], cfg["k"])
        ref = tcn_block_ref(x, params, kernel_size=cfg["k"], dilation=cfg["dil"],
                            causal=cfg["causal"])
        out = tcn_block_pallas(x, params, kernel_size=cfg["k"],
                               dilation=cfg["dil"], causal=cfg["causal"],
                               time_tile=cfg["tile"], matmul_dtype=jnp.float32)
        out = jax.block_until_ready(out)
        assert out.shape == ref.shape, (out.shape, ref.shape)
        assert jnp.allclose(out, ref, atol=1e-4, rtol=1e-4), \
            "f32 mismatch vs reference"

    # Production path: larger channels, bf16 HBM streaming in/out, bf16 MXU
    # operands with f32 accumulation, big default time tile.
    key, kx, kp = jax.random.split(key, 3)
    B, c_in, c_res, k, dil, T = 2, 64, 64, 5, 2, 1536
    x = jax.random.normal(kx, (B, c_in, T), jnp.float32)
    params = make_params(kp, c_in, c_res, k)
    ref = tcn_block_ref(x, params, kernel_size=k, dilation=dil, causal=True)
    out = tcn_block_pallas(x.astype(jnp.bfloat16), params, kernel_size=k,
                           dilation=dil, causal=True,
                           matmul_dtype=jnp.bfloat16, out_dtype=jnp.bfloat16)
    out = jax.block_until_ready(out)
    assert out.shape == ref.shape, (out.shape, ref.shape)
    rel_err = (jnp.max(jnp.abs(out.astype(jnp.float32) - ref))
               / (jnp.max(jnp.abs(ref)) + 1e-6))
    assert rel_err < 5e-2, f"bf16 mismatch vs reference (rel_err={rel_err})"

    print("KERNEL_OK")
</pallas_src>

<mosaic_0001>
module attributes {stable_mosaic.version = 11 : i64} {
  func.func @_tcn_block_kernel(%arg0: i32, %arg1: i32, %arg2: memref<1x8x128xf32, #tpu.memory_space<vmem>>, %arg3: memref<1x8x128xf32, #tpu.memory_space<vmem>>, %arg4: memref<8x3xf32, #tpu.memory_space<vmem>>, %arg5: memref<8x1xf32, #tpu.memory_space<vmem>>, %arg6: memref<8x8xf32, #tpu.memory_space<vmem>>, %arg7: memref<8x1xf32, #tpu.memory_space<vmem>>, %arg8: memref<8x8xf32, #tpu.memory_space<vmem>>, %arg9: memref<8x1xf32, #tpu.memory_space<vmem>>, %arg10: memref<1x8x128xf32, #tpu.memory_space<vmem>>, %arg11: memref<8x256xf32, #tpu.memory_space<vmem>>) attributes {dimension_semantics = [#tpu.dimension_semantics<parallel>, #tpu.dimension_semantics<parallel>], iteration_bounds = array<i64: 2, 3>, scalar_prefetch = 0 : i64, scratch_operands = 1 : i64, tpu.core_type = #tpu.core_type<tc>, window_params = [{transform_indices = @transform_0, window_bounds = array<i64: 1, 8, 128>}, {transform_indices = @transform_1, window_bounds = array<i64: 1, 8, 128>}, {pipeline_mode = #tpu.pipeline_mode<synchronous>, transform_indices = @transform_2, window_bounds = array<i64: 8, 3>}, {pipeline_mode = #tpu.pipeline_mode<synchronous>, transform_indices = @transform_3, window_bounds = array<i64: 8, 1>}, {pipeline_mode = #tpu.pipeline_mode<synchronous>, transform_indices = @transform_4, window_bounds = array<i64: 8, 8>}, {pipeline_mode = #tpu.pipeline_mode<synchronous>, transform_indices = @transform_5, window_bounds = array<i64: 8, 1>}, {pipeline_mode = #tpu.pipeline_mode<synchronous>, transform_indices = @transform_6, window_bounds = array<i64: 8, 8>}, {pipeline_mode = #tpu.pipeline_mode<synchronous>, transform_indices = @transform_7, window_bounds = array<i64: 8, 1>}, {transform_indices = @transform_8, window_bounds = array<i64: 1, 8, 128>}]} {
    %c0 = arith.constant 0 : index
    %c0_0 = arith.constant 0 : index
    %c0_1 = arith.constant 0 : index
    %0 = vector.load %arg2[%c0, %c0_0, %c0_1] : memref<1x8x128xf32, #tpu.memory_space<vmem>>, vector<1x8x128xf32>
    %1 = vector.shape_cast %0 : vector<1x8x128xf32> to vector<8x128xf32>
    %c0_2 = arith.constant 0 : index
    %c0_3 = arith.constant 0 : index
    %2 = vector.load %arg11[%c0_2, %c0_3] : memref<8x256xf32, #tpu.memory_space<vmem>>, vector<8x128xf32>
    tpu.vector_store %arg11[%c0_2, %c0_3], %1 {strides = array<i32>} : memref<8x256xf32, #tpu.memory_space<vmem>>, vector<8x128xf32>,
    %c0_4 = arith.constant 0 : index
    %c0_5 = arith.constant 0 : index
    %c0_6 = arith.constant 0 : index
    %3 = vector.load %arg3[%c0_4, %c0_5, %c0_6] : memref<1x8x128xf32, #tpu.memory_space<vmem>>, vector<1x8x128xf32>
    %4 = vector.shape_cast %3 : vector<1x8x128xf32> to vector<8x128xf32>
    %c0_7 = arith.constant 0 : index
    %c128 = arith.constant 128 : index
    %5 = vector.load %arg11[%c0_7, %c128] : memref<8x256xf32, #tpu.memory_space<vmem>>, vector<8x128xf32>
    tpu.vector_store %arg11[%c0_7, %c128], %4 {strides = array<i32>} : memref<8x256xf32, #tpu.memory_space<vmem>>, vector<8x128xf32>,
    %c0_8 = arith.constant 0 : index
    %c0_9 = arith.constant 0 : index
    %6 = vector.load %arg11[%c0_8, %c0_9] : memref<8x256xf32, #tpu.memory_space<vmem>>, vector<8x128xf32>
    %c0_10 = arith.constant 0 : index
    %c0_11 = arith.constant 0 : index
    %7 = vector.load %arg4[%c0_10, %c0_11] : memref<8x3xf32, #tpu.memory_space<vmem>>, vector<8x1xf32>
    %8 = vector.broadcast %7 : vector<8x1xf32> to vector<8x128xf32>
    %9 = arith.mulf %6, %8 : vector<8x128xf32>
    %c0_12 = arith.constant 0 : index
    %c2 = arith.constant 2 : index
    %10 = vector.load %arg11[%c0_12, %c2] : memref<8x256xf32, #tpu.memory_space<vmem>>, vector<8x128xf32>
    %c0_13 = arith.constant 0 : index
    %c1 = arith.constant 1 : index
    %11 = vector.load %arg4[%c0_13, %c1] : memref<8x3xf32, #tpu.memory_space<vmem>>, vector<8x1xf32>
    %12 = vector.broadcast %11 : vector<8x1xf32> to vector<8x128xf32>
    %13 = arith.mulf %10, %12 : vector<8x128xf32>
    %14 = arith.addf %9, %13 : vector<8x128xf32>
    %c0_14 = arith.constant 0 : index
    %c4 = arith.constant 4 : index
    %15 = vector.load %arg11[%c0_14, %c4] : memref<8x256xf32, #tpu.memory_space<vmem>>, vector<8x128xf32>
    %c0_15 = arith.constant 0 : index
    %c2_16 = arith.constant 2 : index
    %16 = vector.load %arg4[%c0_15, %c2_16] : memref<8x3xf32, #tpu.memory_space<vmem>>, vector<8x1xf32>
    %17 = vector.broadcast %16 : vector<8x1xf32> to vector<8x128xf32>
    %18 = arith.mulf %15, %17 : vector<8x128xf32>
    %19 = arith.addf %14, %18 : vector<8x128xf32>
    %c0_17 = arith.constant 0 : index
    %c0_18 = arith.constant 0 : index
    %20 = vector.load %arg5[%c0_17, %c0_18] : memref<8x1xf32, #tpu.memory_space<vmem>>, vector<8x1xf32>
    %21 = vector.broadcast %20 : vector<8x1xf32> to vector<8x128xf32>
    %22 = arith.addf %19, %21 : vector<8x128xf32>
    %cst = arith.constant 0.000000e+00 : f32
    %23 = vector.broadcast %cst : f32 to vector<8x128xf32>
    %24 = arith.maximumf %22, %23 : vector<8x128xf32>
    %c0_19 = arith.constant 0 : index
    %c0_20 = arith.constant 0 : index
    %25 = vector.load %arg6[%c0_19, %c0_20] : memref<8x8xf32, #tpu.memory_space<vmem>>, vector<8x8xf32>
    %26 = vector.extract_strided_slice %25 {offsets = [0, 0], sizes = [8, 1], strides = [1, 1]} : vector<8x8xf32> to vector<8x1xf32>
    %27 = vector.extract_strided_slice %24 {offsets = [0, 0], sizes = [1, 128], strides = [1, 1]} : vector<8x128xf32> to vector<1x128xf32>
    %28 = vector.broadcast %26 : vector<8x1xf32> to vector<8x128xf32>
    %29 = vector.broadcast %27 : vector<1x128xf32> to vector<8x128xf32>
    %30 = arith.mulf %28, %29 : vector<8x128xf32>
    %31 = vector.extract_strided_slice %25 {offsets = [0, 1], sizes = [8, 1], strides = [1, 1]} : vector<8x8xf32> to vector<8x1xf32>
    %32 = vector.extract_strided_slice %24 {offsets = [1, 0], sizes = [1, 128], strides = [1, 1]} : vector<8x128xf32> to vector<1x128xf32>
    %33 = vector.broadcast %31 : vector<8x1xf32> to vector<8x128xf32>
    %34 = vector.broadcast %32 : vector<1x128xf32> to vector<8x128xf32>
    %35 = arith.mulf %33, %34 : vector<8x128xf32>
    %36 = arith.addf %30, %35 : vector<8x128xf32>
    %37 = vector.extract_strided_slice %25 {offsets = [0, 2], sizes = [8, 1], strides = [1, 1]} : vector<8x8xf32> to vector<8x1xf32>
    %38 = vector.extract_strided_slice %24 {offsets = [2, 0], sizes = [1, 128], strides = [1, 1]} : vector<8x128xf32> to vector<1x128xf32>
    %39 = vector.broadcast %37 : vector<8x1xf32> to vector<8x128xf32>
    %40 = vector.broadcast %38 : vector<1x128xf32> to vector<8x128xf32>
    %41 = arith.mulf %39, %40 : vector<8x128xf32>
    %42 = arith.addf %36, %41 : vector<8x128xf32>
    %43 = vector.extract_strided_slice %25 {offsets = [0, 3], sizes = [8, 1], strides = [1, 1]} : vector<8x8xf32> to vector<8x1xf32>
    %44 = vector.extract_strided_slice %24 {offsets = [3, 0], sizes = [1, 128], strides = [1, 1]} : vector<8x128xf32> to vector<1x128xf32>
    %45 = vector.broadcast %43 : vector<8x1xf32> to vector<8x128xf32>
    %46 = vector.broadcast %44 : vector<1x128xf32> to vector<8x128xf32>
    %47 = arith.mulf %45, %46 : vector<8x128xf32>
    %48 = arith.addf %42, %47 : vector<8x128xf32>
    %49 = vector.extract_strided_slice %25 {offsets = [0, 4], sizes = [8, 1], strides = [1, 1]} : vector<8x8xf32> to vector<8x1xf32>
    %50 = vector.extract_strided_slice %24 {offsets = [4, 0], sizes = [1, 128], strides = [1, 1]} : vector<8x128xf32> to vector<1x128xf32>
    %51 = vector.broadcast %49 : vector<8x1xf32> to vector<8x128xf32>
    %52 = vector.broadcast %50 : vector<1x128xf32> to vector<8x128xf32>
    %53 = arith.mulf %51, %52 : vector<8x128xf32>
    %54 = arith.addf %48, %53 : vector<8x128xf32>
    %55 = vector.extract_strided_slice %25 {offsets = [0, 5], sizes = [8, 1], strides = [1, 1]} : vector<8x8xf32> to vector<8x1xf32>
    %56 = vector.extract_strided_slice %24 {offsets = [5, 0], sizes = [1, 128], strides = [1, 1]} : vector<8x128xf32> to vector<1x128xf32>
    %57 = vector.broadcast %55 : vector<8x1xf32> to vector<8x128xf32>
    %58 = vector.broadcast %56 : vector<1x128xf32> to vector<8x128xf32>
    %59 = arith.mulf %57, %58 : vector<8x128xf32>
    %60 = arith.addf %54, %59 : vector<8x128xf32>
    %61 = vector.extract_strided_slice %25 {offsets = [0, 6], sizes = [8, 1], strides = [1, 1]} : vector<8x8xf32> to vector<8x1xf32>
    %62 = vector.extract_strided_slice %24 {offsets = [6, 0], sizes = [1, 128], strides = [1, 1]} : vector<8x128xf32> to vector<1x128xf32>
    %63 = vector.broadcast %61 : vector<8x1xf32> to vector<8x128xf32>
    %64 = vector.broadcast %62 : vector<1x128xf32> to vector<8x128xf32>
    %65 = arith.mulf %63, %64 : vector<8x128xf32>
    %66 = arith.addf %60, %65 : vector<8x128xf32>
    %67 = vector.extract_strided_slice %25 {offsets = [0, 7], sizes = [8, 1], strides = [1, 1]} : vector<8x8xf32> to vector<8x1xf32>
    %68 = vector.extract_strided_slice %24 {offsets = [7, 0], sizes = [1, 128], strides = [1, 1]} : vector<8x128xf32> to vector<1x128xf32>
    %69 = vector.broadcast %67 : vector<8x1xf32> to vector<8x128xf32>
    %70 = vector.broadcast %68 : vector<1x128xf32> to vector<8x128xf32>
    %71 = arith.mulf %69, %70 : vector<8x128xf32>
    %72 = arith.addf %66, %71 : vector<8x128xf32>
    %c0_21 = arith.constant 0 : index
    %c0_22 = arith.constant 0 : index
    %73 = vector.load %arg7[%c0_21, %c0_22] : memref<8x1xf32, #tpu.memory_space<vmem>>, vector<8x1xf32>
    %74 = vector.broadcast %73 : vector<8x1xf32> to vector<8x128xf32>
    %75 = arith.addf %72, %74 : vector<8x128xf32>
    %cst_23 = arith.constant 0.000000e+00 : f32
    %76 = vector.broadcast %cst_23 : f32 to vector<8x128xf32>
    %77 = arith.maximumf %75, %76 : vector<8x128xf32>
    %c0_24 = arith.constant 0 : index
    %c0_25 = arith.constant 0 : index
    %78 = vector.load %arg8[%c0_24, %c0_25] : memref<8x8xf32, #tpu.memory_space<vmem>>, vector<8x8xf32>
    %79 = vector.extract_strided_slice %78 {offsets = [0, 0], sizes = [8, 1], strides = [1, 1]} : vector<8x8xf32> to vector<8x1xf32>
    %80 = vector.extract_strided_slice %77 {offsets = [0, 0], sizes = [1, 128], strides = [1, 1]} : vector<8x128xf32> to vector<1x128xf32>
    %81 = vector.broadcast %79 : vector<8x1xf32> to vector<8x128xf32>
    %82 = vector.broadcast %80 : vector<1x128xf32> to vector<8x128xf32>
    %83 = arith.mulf %81, %82 : vector<8x128xf32>
    %84 = vector.extract_strided_slice %78 {offsets = [0, 1], sizes = [8, 1], strides = [1, 1]} : vector<8x8xf32> to vector<8x1xf32>
    %85 = vector.extract_strided_slice %77 {offsets = [1, 0], sizes = [1, 128], strides = [1, 1]} : vector<8x128xf32> to vector<1x128xf32>
    %86 = vector.broadcast %84 : vector<8x1xf32> to vector<8x128xf32>
    %87 = vector.broadcast %85 : vector<1x128xf32> to vector<8x128xf32>
    %88 = arith.mulf %86, %87 : vector<8x128xf32>
    %89 = arith.addf %83, %88 : vector<8x128xf32>
    %90 = vector.extract_strided_slice %78 {offsets = [0, 2], sizes = [8, 1], strides = [1, 1]} : vector<8x8xf32> to vector<8x1xf32>
    %91 = vector.extract_strided_slice %77 {offsets = [2, 0], sizes = [1, 128], strides = [1, 1]} : vector<8x128xf32> to vector<1x128xf32>
    %92 = vector.broadcast %90 : vector<8x1xf32> to vector<8x128xf32>
    %93 = vector.broadcast %91 : vector<1x128xf32> to vector<8x128xf32>
    %94 = arith.mulf %92, %93 : vector<8x128xf32>
    %95 = arith.addf %89, %94 : vector<8x128xf32>
    %96 = vector.extract_strided_slice %78 {offsets = [0, 3], sizes = [8, 1], strides = [1, 1]} : vector<8x8xf32> to vector<8x1xf32>
    %97 = vector.extract_strided_slice %77 {offsets = [3, 0], sizes = [1, 128], strides = [1, 1]} : vector<8x128xf32> to vector<1x128xf32>
    %98 = vector.broadcast %96 : vector<8x1xf32> to vector<8x128xf32>
    %99 = vector.broadcast %97 : vector<1x128xf32> to vector<8x128xf32>
    %100 = arith.mulf %98, %99 : vector<8x128xf32>
    %101 = arith.addf %95, %100 : vector<8x128xf32>
    %102 = vector.extract_strided_slice %78 {offsets = [0, 4], sizes = [8, 1], strides = [1, 1]} : vector<8x8xf32> to vector<8x1xf32>
    %103 = vector.extract_strided_slice %77 {offsets = [4, 0], sizes = [1, 128], strides = [1, 1]} : vector<8x128xf32> to vector<1x128xf32>
    %104 = vector.broadcast %102 : vector<8x1xf32> to vector<8x128xf32>
    %105 = vector.broadcast %103 : vector<1x128xf32> to vector<8x128xf32>
    %106 = arith.mulf %104, %105 : vector<8x128xf32>
    %107 = arith.addf %101, %106 : vector<8x128xf32>
    %108 = vector.extract_strided_slice %78 {offsets = [0, 5], sizes = [8, 1], strides = [1, 1]} : vector<8x8xf32> to vector<8x1xf32>
    %109 = vector.extract_strided_slice %77 {offsets = [5, 0], sizes = [1, 128], strides = [1, 1]} : vector<8x128xf32> to vector<1x128xf32>
    %110 = vector.broadcast %108 : vector<8x1xf32> to vector<8x128xf32>
    %111 = vector.broadcast %109 : vector<1x128xf32> to vector<8x128xf32>
    %112 = arith.mulf %110, %111 : vector<8x128xf32>
    %113 = arith.addf %107, %112 : vector<8x128xf32>
    %114 = vector.extract_strided_slice %78 {offsets = [0, 6], sizes = [8, 1], strides = [1, 1]} : vector<8x8xf32> to vector<8x1xf32>
    %115 = vector.extract_strided_slice %77 {offsets = [6, 0], sizes = [1, 128], strides = [1, 1]} : vector<8x128xf32> to vector<1x128xf32>
    %116 = vector.broadcast %114 : vector<8x1xf32> to vector<8x128xf32>
    %117 = vector.broadcast %115 : vector<1x128xf32> to vector<8x128xf32>
    %118 = arith.mulf %116, %117 : vector<8x128xf32>
    %119 = arith.addf %113, %118 : vector<8x128xf32>
    %120 = vector.extract_strided_slice %78 {offsets = [0, 7], sizes = [8, 1], strides = [1, 1]} : vector<8x8xf32> to vector<8x1xf32>
    %121 = vector.extract_strided_slice %77 {offsets = [7, 0], sizes = [1, 128], strides = [1, 1]} : vector<8x128xf32> to vector<1x128xf32>
    %122 = vector.broadcast %120 : vector<8x1xf32> to vector<8x128xf32>
    %123 = vector.broadcast %121 : vector<1x128xf32> to vector<8x128xf32>
    %124 = arith.mulf %122, %123 : vector<8x128xf32>
    %125 = arith.addf %119, %124 : vector<8x128xf32>
    %c0_26 = arith.constant 0 : index
    %c0_27 = arith.constant 0 : index
    %126 = vector.load %arg9[%c0_26, %c0_27] : memref<8x1xf32, #tpu.memory_space<vmem>>, vector<8x1xf32>
    %127 = vector.broadcast %126 : vector<8x1xf32> to vector<8x128xf32>
    %128 = arith.addf %125, %127 : vector<8x128xf32>
    %c0_28 = arith.constant 0 : index
    %c4_29 = arith.constant 4 : index
    %129 = vector.load %arg11[%c0_28, %c4_29] : memref<8x256xf32, #tpu.memory_space<vmem>>, vector<8x128xf32>
    %130 = arith.addf %128, %129 : vector<8x128xf32>
    %cst_30 = arith.constant 0.000000e+00 : f32
    %131 = vector.broadcast %cst_30 : f32 to vector<8x128xf32>
    %132 = arith.maximumf %130, %131 : vector<8x128xf32>
    %c0_31 = arith.constant 0 : index
    %c0_32 = arith.constant 0 : index
    %c0_33 = arith.constant 0 : index
    %133 = vector.load %arg10[%c0_31, %c0_32, %c0_33] : memref<1x8x128xf32, #tpu.memory_space<vmem>>, vector<1x8x128xf32>
    %134 = vector.shape_cast %133 : vector<1x8x128xf32> to vector<8x128xf32>
    %135 = vector.shape_cast %132 : vector<8x128xf32> to vector<1x8x128xf32>
    tpu.vector_store %arg10[%c0_31, %c0_32, %c0_33], %135 {strides = array<i32>} : memref<1x8x128xf32, #tpu.memory_space<vmem>>, vector<1x8x128xf32>,
    return
  }
  func.func @transform_0(%arg0: i32, %arg1: i32) -> (i32, i32, i32) {
    %c0_i32 = arith.constant 0 : i32
    %c0_i32_0 = arith.constant 0 : i32
    return %arg0, %c0_i32, %arg1 : i32, i32, i32
  }
  func.func @transform_1(%arg0: i32, %arg1: i32) -> (i32, i32, i32) {
    %c1_i32 = arith.constant 1 : i32
    %0 = arith.addi %arg1, %c1_i32 : i32
    %c1_i32_0 = arith.constant 1 : i32
    %1 = arith.muli %0, %c1_i32_0 : i32
    %c2_i32 = arith.constant 2 : i32
    %2 = arith.minsi %1, %c2_i32 : i32
    %c0_i32 = arith.constant 0 : i32
    %c0_i32_1 = arith.constant 0 : i32
    return %arg0, %c0_i32, %2 : i32, i32, i32
  }
  func.func @transform_2(%arg0: i32, %arg1: i32) -> (i32, i32) {
    %c0_i32 = arith.constant 0 : i32
    %c0_i32_0 = arith.constant 0 : i32
    %c0_i32_1 = arith.constant 0 : i32
    return %c0_i32, %c0_i32_0 : i32, i32
  }
  func.func @transform_3(%arg0: i32, %arg1: i32) -> (i32, i32) {
    %c0_i32 = arith.constant 0 : i32
    %c0_i32_0 = arith.constant 0 : i32
    %c0_i32_1 = arith.constant 0 : i32
    return %c0_i32, %c0_i32_0 : i32, i32
  }
  func.func @transform_4(%arg0: i32, %arg1: i32) -> (i32, i32) {
    %c0_i32 = arith.constant 0 : i32
    %c0_i32_0 = arith.constant 0 : i32
    %c0_i32_1 = arith.constant 0 : i32
    return %c0_i32, %c0_i32_0 : i32, i32
  }
  func.func @transform_5(%arg0: i32, %arg1: i32) -> (i32, i32) {
    %c0_i32 = arith.constant 0 : i32
    %c0_i32_0 = arith.constant 0 : i32
    %c0_i32_1 = arith.constant 0 : i32
    return %c0_i32, %c0_i32_0 : i32, i32
  }
  func.func @transform_6(%arg0: i32, %arg1: i32) -> (i32, i32) {
    %c0_i32 = arith.constant 0 : i32
    %c0_i32_0 = arith.constant 0 : i32
    %c0_i32_1 = arith.constant 0 : i32
    return %c0_i32, %c0_i32_0 : i32, i32
  }
  func.func @transform_7(%arg0: i32, %arg1: i32) -> (i32, i32) {
    %c0_i32 = arith.constant 0 : i32
    %c0_i32_0 = arith.constant 0 : i32
    %c0_i32_1 = arith.constant 0 : i32
    return %c0_i32, %c0_i32_0 : i32, i32
  }
  func.func @transform_8(%arg0: i32, %arg1: i32) -> (i32, i32, i32) {
    %c0_i32 = arith.constant 0 : i32
    %c0_i32_0 = arith.constant 0 : i32
    return %arg0, %c0_i32, %arg1 : i32, i32, i32
  }
}

</mosaic_0001>

<llo_original>
// kernel: tpu_custom_call.1
$region0: #{tpu_custom_call.1}
  #allocation0 [shape = 'u32[]', space=smem, size = 0x4, offset = 0x4, fixed_abs, tag = 'smem constant byte address 0x4 - core index']
  #allocation1 [shape = 'u32[72,128]{1,0:T(1,128)}', space=vmem, size = 0x9000, scoped, tag = 'internal scratch']
  #allocation2 [shape = 'f32[8,256]{1,0:T(8,128)}', space=vmem, size = 0x2000, scoped, tag = 'scratch operand']
  %s0 = inlined_call_operand.hbm [shape: f32[2,8,384], index: 0, kind: input, shape index: {}]
  %s1 = inlined_call_operand.hbm [shape: f32[2,8,384], index: 1, kind: input, shape index: {}]
  %s2 = inlined_call_operand.vmem [shape: f32[8,3], index: 2, kind: input, shape index: {}]
  %s3 = inlined_call_operand.vmem [shape: f32[8,1], index: 3, kind: input, shape index: {}]
  %s4 = inlined_call_operand.vmem [shape: f32[8,8], index: 4, kind: input, shape index: {}]
  %s5 = inlined_call_operand.vmem [shape: f32[8,1], index: 5, kind: input, shape index: {}]
  %s6 = inlined_call_operand.vmem [shape: f32[8,8], index: 6, kind: input, shape index: {}]
  %s7 = inlined_call_operand.vmem [shape: f32[8,1], index: 7, kind: input, shape index: {}]
  %s8 = inlined_call_operand.hbm [shape: f32[2,8,380], index: 8, kind: output, shape index: {}]
  %s9 = sld [smem:[#allocation0]]
  $region73: #{tpu_custom_call.1} parent=0
    _
  %s11 = ssub.s32 1, %s9
  %s12 = scalar_select 0, %s11, %s9
  $region1: #{tpu_custom_call.1} parent=0
    #allocation3 [shape = 'u8[8192]{0}', space=vmem, size = 0x2000, scoped, tag = 'input window, operand 0']
    #allocation4 [shape = 's32[2]{0}', space=sflag, size = 0x8, scoped, tag = 'scoped memory for tpu_custom_call.1']
    #allocation5 [shape = 's32[2]{0}', space=sflag, size = 0x8, scoped, tag = 'scoped memory for tpu_custom_call.1']
    #allocation6 [shape = 'u8[8192]{0}', space=vmem, size = 0x2000, scoped, tag = 'input window, operand 1']
    #allocation7 [shape = 's32[2]{0}', space=sflag, size = 0x8, scoped, tag = 'scoped memory for tpu_custom_call.1']
    #allocation8 [shape = 'u8[8192]{0}', space=vmem, size = 0x2000, scoped, tag = 'output window, operand 0']
    %13 = vsyncpa [#allocation4], 0
    %s14 = scalar_lea.sflag [#allocation4], 1
    %15 = vsyncpa %s14, 0
    %16 = vsyncpa [#allocation7], 0
    %s17 = scalar_lea.sflag [#allocation7], 1
    %18 = vsyncpa %s17, 0
    %19 = vsyncpa [#allocation5], 0
    %s20 = scalar_lea.sflag [#allocation5], 1
    %21 = vsyncpa %s20, 0
    loop: start=0, step=1, limit=8
    $region2: #{tpu_custom_call.1} parent=1 // loop_pre_header
      _
    $region3: #{tpu_custom_call.1} parent=1 // loop_header
      %s23 = sphi 0, %s27
      %p24 = scmp.ge.s32.totalorder %s23, 8
      %s30 = sphi 0, %s42
      %s31 = sphi 0, %s38
      %s32 = sphi 0, %s30
      %s33 = sphi 0, %s31
      %s34 = sphi 0, %s32
      %s35 = sphi 0, %s33
      %s47 = sphi 0, %s49
      %s50 = sphi 0, %s47
      %s51 = sphi 0, %s50
      %s67 = sphi 0, %s51
      %s81 = sphi 0, %s83
      %s84 = sphi 0, %s81
      %s85 = sphi 0, %s84
      %s101 = sphi 0, %s85
      %s105 = sphi 0, %s105
      %s107 = sphi 0, %s105
      %s108 = sphi 0, %s107
      %s122 = sphi 0, %s108
      %s126 = sphi 0, %s126
      %s128 = sphi 0, %s126
      %s129 = sphi 0, %s128
      %s143 = sphi 0, %s129
      %s147 = sphi 0, %s147
      %s149 = sphi 0, %s147
      %s150 = sphi 0, %s149
      %s164 = sphi 0, %s150
      %s168 = sphi 0, %s168
      %s170 = sphi 0, %s168
      %s171 = sphi 0, %s170
      %s185 = sphi 0, %s171
      %s189 = sphi 0, %s189
      %s191 = sphi 0, %s189
      %s192 = sphi 0, %s191
      %s206 = sphi 0, %s192
      %s210 = sphi 0, %s210
      %s212 = sphi 0, %s210
      %s213 = sphi 0, %s212
      %s227 = sphi 0, %s213
      %s235 = sphi 0, %s237
      %s238 = sphi 0, %s235
      %s239 = sphi 0, %s238
      %s255 = sphi 0, %s239
    $region4: #{tpu_custom_call.1} parent=1 // loop_header_branch
      %26 = sbr.rel (%p24) target = $region8
    $region5: #{tpu_custom_call.1} parent=1 // loop_body
      %s28 = ssub.s32 %s23, 1
      %s29 = ssub.s32 %s23, 2
      %s36 = sadd.s32 1, %s31
      %p37 = scmp.ge.s32.totalorder %s36, 3
      %s38 = scalar_select %p37, 0, %s36
      %s39 = sadd.s32 1, %s30
      %s40 = scalar_select %p37, %s39, %s30
      %p41 = scmp.ge.s32.totalorder %s40, 2
      %s42 = scalar_select %p41, 0, %s40
      %s43 = ssub.s32 %s30, %s42
      %s44 = ssub.s32 %s31, %s38
      %s45 = sor.u32 %s43, %s44
      %p46 = scmp.eq.s32.totalorder %s45, 0
      %s48 = sadd.s32 %s47, 1
      %s49 = scalar_select %p46, %s47, %s48
      %p52 = pneg %p46
      %p53 = scmp.eq.s32.totalorder %s23, 5
      %p54 = por %p52, %p53
      %p55 = scmp.ne.s32.totalorder %s47, %s50
      %p56 = scmp.eq.s32.totalorder %s23, 0
      %p57 = por %p55, %p56
      %p58 = scmp.ne.s32.totalorder %s47, %s50
      %p59 = scmp.eq.s32.totalorder %s28, 5
      %p60 = por %p58, %p59
      %p61 = scmp.ne.s32.totalorder %s50, %s51
      %p62 = scmp.eq.s32.totalorder %s28, 0
      %p63 = por %p61, %p62
      %p64 = scmp.ne.s32.totalorder %s50, %s51
      %p65 = scmp.eq.s32.totalorder %s29, 5
      %p66 = por %p64, %p65
      %p68 = scmp.ne.s32.totalorder %s51, %s67
      %p69 = scmp.eq.s32.totalorder %s29, 0
      %p70 = por %p68, %p69
      %s71 = sadd.s32 %s31, 1
      %p72 = scmp.lt.s32.totalorder %s71, 2
      %s73 = scalar_select %p72, %s71, 2
      %s74 = sadd.s32 %s38, 1
      %p75 = scmp.lt.s32.totalorder %s74, 2
      %s76 = scalar_select %p75, %s74, 2
      %s77 = ssub.s32 %s30, %s42
      %s78 = ssub.s32 %s73, %s76
      %s79 = sor.u32 %s77, %s78
      %p80 = scmp.eq.s32.totalorder %s79, 0
      %s82 = sadd.s32 %s81, 1
      %s83 = scalar_select %p80, %s81, %s82
      %p86 = pneg %p80
      %p87 = scmp.eq.s32.totalorder %s23, 5
      %p88 = por %p86, %p87
      %p89 = scmp.ne.s32.totalorder %s81, %s84
      %p90 = scmp.eq.s32.totalorder %s23, 0
      %p91 = por %p89, %p90
      %p92 = scmp.ne.s32.totalorder %s81, %s84
      %p93 = scmp.eq.s32.totalorder %s28, 5
      %p94 = por %p92, %p93
      %p95 = scmp.ne.s32.totalorder %s84, %s85
      %p96 = scmp.eq.s32.totalorder %s28, 0
      %p97 = por %p95, %p96
      %p98 = scmp.ne.s32.totalorder %s84, %s85
      %p99 = scmp.eq.s32.totalorder %s29, 5
      %p100 = por %p98, %p99
      %p102 = scmp.ne.s32.totalorder %s85, %s101
      %p103 = scmp.eq.s32.totalorder %s29, 0
      %p104 = por %p102, %p103
      %s106 = sadd.s32 %s105, 1
      %p109 = scmp.eq.s32.totalorder %s23, 5
      %p110 = scmp.ne.s32.totalorder %s105, %s107
      %p111 = scmp.eq.s32.totalorder %s23, 0
      %p112 = por %p110, %p111
      %p113 = scmp.ne.s32.totalorder %s105, %s107
      %p114 = scmp.eq.s32.totalorder %s28, 5
      %p115 = por %p113, %p114
      %p116 = scmp.ne.s32.totalorder %s107, %s108
      %p117 = scmp.eq.s32.totalorder %s28, 0
      %p118 = por %p116, %p117
      %p119 = scmp.ne.s32.totalorder %s107, %s108
      %p120 = scmp.eq.s32.totalorder %s29, 5
      %p121 = por %p119, %p120
      %p123 = scmp.ne.s32.totalorder %s108, %s122
      %p124 = scmp.eq.s32.totalorder %s29, 0
      %p125 = por %p123, %p124
      %s127 = sadd.s32 %s126, 1
      %p130 = scmp.eq.s32.totalorder %s23, 5
      %p131 = scmp.ne.s32.totalorder %s126, %s128
      %p132 = scmp.eq.s32.totalorder %s23, 0
      %p133 = por %p131, %p132
      %p134 = scmp.ne.s32.totalorder %s126, %s128
      %p135 = scmp.eq.s32.totalorder %s28, 5
      %p136 = por %p134, %p135
      %p137 = scmp.ne.s32.totalorder %s128, %s129
      %p138 = scmp.eq.s32.totalorder %s28, 0
      %p139 = por %p137, %p138
      %p140 = scmp.ne.s32.totalorder %s128, %s129
      %p141 = scmp.eq.s32.totalorder %s29, 5
      %p142 = por %p140, %p141
      %p144 = scmp.ne.s32.totalorder %s129, %s143
      %p145 = scmp.eq.s32.totalorder %s29, 0
      %p146 = por %p144, %p145
      %s148 = sadd.s32 %s147, 1
      %p151 = scmp.eq.s32.totalorder %s23, 5
      %p152 = scmp.ne.s32.totalorder %s147, %s149
      %p153 = scmp.eq.s32.totalorder %s23, 0
      %p154 = por %p152, %p153
      %p155 = scmp.ne.s32.totalorder %s147, %s149
      %p156 = scmp.eq.s32.totalorder %s28, 5
      %p157 = por %p155, %p156
      %p158 = scmp.ne.s32.totalorder %s149, %s150
      %p159 = scmp.eq.s32.totalorder %s28, 0
      %p160 = por %p158, %p159
      %p161 = scmp.ne.s32.totalorder %s149, %s150
      %p162 = scmp.eq.s32.totalorder %s29, 5
      %p163 = por %p161, %p162
      %p165 = scmp.ne.s32.totalorder %s150, %s164
      %p166 = scmp.eq.s32.totalorder %s29, 0
      %p167 = por %p165, %p166
      %s169 = sadd.s32 %s168, 1
      %p172 = scmp.eq.s32.totalorder %s23, 5
      %p173 = scmp.ne.s32.totalorder %s168, %s170
      %p174 = scmp.eq.s32.totalorder %s23, 0
      %p175 = por %p173, %p174
      %p176 = scmp.ne.s32.totalorder %s168, %s170
      %p177 = scmp.eq.s32.totalorder %s28, 5
      %p178 = por %p176, %p177
      %p179 = scmp.ne.s32.totalorder %s170, %s171
      %p180 = scmp.eq.s32.totalorder %s28, 0
      %p181 = por %p179, %p180
      %p182 = scmp.ne.s32.totalorder %s170, %s171
      %p183 = scmp.eq.s32.totalorder %s29, 5
      %p184 = por %p182, %p183
      %p186 = scmp.ne.s32.totalorder %s171, %s185
      %p187 = scmp.eq.s32.totalorder %s29, 0
      %p188 = por %p186, %p187
      %s190 = sadd.s32 %s189, 1
      %p193 = scmp.eq.s32.totalorder %s23, 5
      %p194 = scmp.ne.s32.totalorder %s189, %s191
      %p195 = scmp.eq.s32.totalorder %s23, 0
      %p196 = por %p194, %p195
      %p197 = scmp.ne.s32.totalorder %s189, %s191
      %p198 = scmp.eq.s32.totalorder %s28, 5
      %p199 = por %p197, %p198
      %p200 = scmp.ne.s32.totalorder %s191, %s192
      %p201 = scmp.eq.s32.totalorder %s28, 0
      %p202 = por %p200, %p201
      %p203 = scmp.ne.s32.totalorder %s191, %s192
      %p204 = scmp.eq.s32.totalorder %s29, 5
      %p205 = por %p203, %p204
      %p207 = scmp.ne.s32.totalorder %s192, %s206
      %p208 = scmp.eq.s32.totalorder %s29, 0
      %p209 = por %p207, %p208
      %s211 = sadd.s32 %s210, 1
      %p214 = scmp.eq.s32.totalorder %s23, 5
      %p215 = scmp.ne.s32.totalorder %s210, %s212
      %p216 = scmp.eq.s32.totalorder %s23, 0
      %p217 = por %p215, %p216
      %p218 = scmp.ne.s32.totalorder %s210, %s212
      %p219 = scmp.eq.s32.totalorder %s28, 5
      %p220 = por %p218, %p219
      %p221 = scmp.ne.s32.totalorder %s212, %s213
      %p222 = scmp.eq.s32.totalorder %s28, 0
      %p223 = por %p221, %p222
      %p224 = scmp.ne.s32.totalorder %s212, %s213
      %p225 = scmp.eq.s32.totalorder %s29, 5
      %p226 = por %p224, %p225
      %p228 = scmp.ne.s32.totalorder %s213, %s227
      %p229 = scmp.eq.s32.totalorder %s29, 0
      %p230 = por %p228, %p229
      %s231 = ssub.s32 %s30, %s42
      %s232 = ssub.s32 %s31, %s38
      %s233 = sor.u32 %s231, %s232
      %p234 = scmp.eq.s32.totalorder %s233, 0
      %s236 = sadd.s32 %s235, 1
      %s237 = scalar_select %p234, %s235, %s236
      %p240 = pneg %p234
      %p241 = scmp.eq.s32.totalorder %s23, 5
      %p242 = por %p240, %p241
      %p243 = scmp.ne.s32.totalorder %s235, %s238
      %p244 = scmp.eq.s32.totalorder %s23, 0
      %p245 = por %p243, %p244
      %p246 = scmp.ne.s32.totalorder %s235, %s238
      %p247 = scmp.eq.s32.totalorder %s28, 5
      %p248 = por %p246, %p247
      %p249 = scmp.ne.s32.totalorder %s238, %s239
      %p250 = scmp.eq.s32.totalorder %s28, 0
      %p251 = por %p249, %p250
      %p252 = scmp.ne.s32.totalorder %s238, %s239
      %p253 = scmp.eq.s32.totalorder %s29, 5
      %p254 = por %p252, %p253
      %p256 = scmp.ne.s32.totalorder %s239, %s255
      %p257 = scmp.eq.s32.totalorder %s29, 0
      %p258 = por %p256, %p257
      %p259 = scmp.le.s32.totalorder 1, %s23
      %p260 = scmp.lt.s32.totalorder %s23, 7
      %p261 = pnand %p259, %p260
      %p262 = pneg %p261
      // Predicated region
      $region9: #{tpu_custom_call.1} parent=5 // pred_check
        _
      $region10: #{tpu_custom_call.1} parent=5 // pred_check_branch
        %264 = sbr.rel (%p261) target = $region12
      $region11: #{tpu_custom_call.1} parent=5 // pred_region
        %s265 = ssub.s32 %s23, 1
        // Predicated region
        $region13: #{tpu_custom_call.1} parent=11 // pred_check
          %p266 = pneg %p118
        $region14: #{tpu_custom_call.1} parent=11 // pred_check_branch
          %268 = sbr.rel (%p266) target = $region16
        $region15: #{tpu_custom_call.1} parent=11 // pred_region
          _
        $region16: #{tpu_custom_call.1} parent=11 // pred_fallthru
          _
        // Predicated region
        $region17: #{tpu_custom_call.1} parent=11 // pred_check
          %p269 = pneg %p139
        $region18: #{tpu_custom_call.1} parent=11 // pred_check_branch
          %271 = sbr.rel (%p269) target = $region20
        $region19: #{tpu_custom_call.1} parent=11 // pred_region
          _
        $region20: #{tpu_custom_call.1} parent=11 // pred_fallthru
          _
        // Predicated region
        $region21: #{tpu_custom_call.1} parent=11 // pred_check
          %p272 = pneg %p160
        $region22: #{tpu_custom_call.1} parent=11 // pred_check_branch
          %274 = sbr.rel (%p272) target = $region24
        $region23: #{tpu_custom_call.1} parent=11 // pred_region
          _
        $region24: #{tpu_custom_call.1} parent=11 // pred_fallthru
          _
        // Predicated region
        $region25: #{tpu_custom_call.1} parent=11 // pred_check
          %p275 = pneg %p181
        $region26: #{tpu_custom_call.1} parent=11 // pred_check_branch
          %277 = sbr.rel (%p275) target = $region28
        $region27: #{tpu_custom_call.1} parent=11 // pred_region
          _
        $region28: #{tpu_custom_call.1} parent=11 // pred_fallthru
          _
        // Predicated region
        $region29: #{tpu_custom_call.1} parent=11 // pred_check
          %p278 = pneg %p202
        $region30: #{tpu_custom_call.1} parent=11 // pred_check_branch
          %280 = sbr.rel (%p278) target = $region32
        $region31: #{tpu_custom_call.1} parent=11 // pred_region
          _
        $region32: #{tpu_custom_call.1} parent=11 // pred_fallthru
          _
        // Predicated region
        $region33: #{tpu_custom_call.1} parent=11 // pred_check
          %p281 = pneg %p223
        $region34: #{tpu_custom_call.1} parent=11 // pred_check_branch
          %283 = sbr.rel (%p281) target = $region36
        $region35: #{tpu_custom_call.1} parent=11 // pred_region
          _
        $region36: #{tpu_custom_call.1} parent=11 // pred_fallthru
          _
      $region12: #{tpu_custom_call.1} parent=5 // pred_fallthru
        _
      %p284 = scmp.lt.s32.totalorder %s23, 6
      // Predicated region
      $region37: #{tpu_custom_call.1} parent=5 // pred_check
        %p285 = pneg %p284
      $region38: #{tpu_custom_call.1} parent=5 // pred_check_branch
        %287 = sbr.rel (%p285) target = $region40
      $region39: #{tpu_custom_call.1} parent=5 // pred_region
        // Predicated region
        $region41: #{tpu_custom_call.1} parent=39 // pred_check
          %p288 = pneg %p57
        $region42: #{tpu_custom_call.1} parent=39 // pred_check_branch
          %290 = sbr.rel (%p288) target = $region44
        $region43: #{tpu_custom_call.1} parent=39 // pred_region
          %s291 = sand.u32 %s47, 1
          %s292 = scalar_lea.sflag [#allocation4], %s291
          %s293 = sand.u32 %s47, 1
          %s294 = smul.addr %s293, 8
          %s295 = scalar_lea.vmem [#allocation3], %s294
          %297 = vsyncadd %s292, 0
          %s298 = smul.addr %s30, 3
          %s299 = sadd.s32 %s31, %s298
          %s300 = smul.addr %s299, 8
          %s301 = scalar_lea.hbm %s0, %s300
          %s303 = sshll.u32 %s301, 4
          %s304 = int_to_ptr.hbm [resolvable:$true] %s303
          %s305 = sshll.u32 %s295, 4
          %s306 = int_to_ptr.vmem [resolvable:$true] %s305
          %308 = dma.hbm_to_vmem [thread:$0]  %s304, 128, %s306, %s292
        $region44: #{tpu_custom_call.1} parent=39 // pred_fallthru
          _
        // Predicated region
        $region45: #{tpu_custom_call.1} parent=39 // pred_check
          %p309 = pneg %p91
        $region46: #{tpu_custom_call.1} parent=39 // pred_check_branch
          %311 = sbr.rel (%p309) target = $region48
        $region47: #{tpu_custom_call.1} parent=39 // pred_region
          %s312 = sand.u32 %s81, 1
          %s313 = scalar_lea.sflag [#allocation7], %s312
          %s314 = sand.u32 %s81, 1
          %s315 = smul.addr %s314, 8
          %s316 = scalar_lea.vmem [#allocation6], %s315
          %s317 = sadd.s32 %s31, 1
          %p318 = scmp.lt.s32.totalorder %s317, 2
          %s319 = scalar_select %p318, %s317, 2
          %321 = vsyncadd %s313, 0
          %s322 = smul.addr %s30, 3
          %s323 = sadd.s32 %s319, %s322
          %s324 = smul.addr %s323, 8
          %s325 = scalar_lea.hbm %s1, %s324
          %s327 = sshll.u32 %s325, 4
          %s328 = int_to_ptr.hbm [resolvable:$true] %s327
          %s329 = sshll.u32 %s316, 4
          %s330 = int_to_ptr.vmem [resolvable:$true] %s329
          %332 = dma.hbm_to_vmem [thread:$0]  %s328, 128, %s330, %s313
        $region48: #{tpu_custom_call.1} parent=39 // pred_fallthru
          _
      $region40: #{tpu_custom_call.1} parent=5 // pred_fallthru
        _
      %p333 = scmp.le.s32.totalorder 1, %s23
      %p334 = scmp.lt.s32.totalorder %s23, 7
      %p335 = pnand %p333, %p334
      %p336 = pneg %p335
      // Predicated region
      $region49: #{tpu_custom_call.1} parent=5 // pred_check
        _
      $region50: #{tpu_custom_call.1} parent=5 // pred_check_branch
        %338 = sbr.rel (%p335) target = $region52
      $region51: #{tpu_custom_call.1} parent=5 // pred_region
        %s339 = ssub.s32 %s23, 1
        %s340 = sand.u32 %s50, 1
        %s341 = scalar_lea.sflag [#allocation4], %s340
        %s342 = sand.u32 %s50, 1
        %s343 = smul.addr %s342, 8
        %s344 = scalar_lea.vmem [#allocation3], %s343
        // Predicated region
        $region53: #{tpu_custom_call.1} parent=51 // pred_check
          %p345 = pneg %p63
        $region54: #{tpu_custom_call.1} parent=51 // pred_check_branch
          %347 = sbr.rel (%p345) target = $region56
        $region55: #{tpu_custom_call.1} parent=51 // pred_region
          %349 = dma.done %s341, 128
        $region56: #{tpu_custom_call.1} parent=51 // pred_fallthru
          _
        %s350 = sand.u32 %s84, 1
        %s351 = scalar_lea.sflag [#allocation7], %s350
        %s352 = sand.u32 %s84, 1
        %s353 = smul.addr %s352, 8
        %s354 = scalar_lea.vmem [#allocation6], %s353
        // Predicated region
        $region57: #{tpu_custom_call.1} parent=51 // pred_check
          %p355 = pneg %p97
        $region58: #{tpu_custom_call.1} parent=51 // pred_check_branch
          %357 = sbr.rel (%p355) target = $region60
        $region59: #{tpu_custom_call.1} parent=51 // pred_region
          %359 = dma.done %s351, 128
        $region60: #{tpu_custom_call.1} parent=51 // pred_fallthru
          _
        %s360 = sand.u32 %s50, 1
        %s361 = scalar_lea.sflag [#allocation4], %s360
        %s362 = sand.u32 %s50, 1
        %s363 = smul.addr %s362, 8
        %s364 = scalar_lea.vmem [#allocation3], %s363
        %p365 = pneg %p63
        %p366 = pneg %p60
        %s367 = sand.u32 %s84, 1
        %s368 = scalar_lea.sflag [#allocation7], %s367
        %s369 = sand.u32 %s84, 1
        %s370 = smul.addr %s369, 8
        %s371 = scalar_lea.vmem [#allocation6], %s370
        %p372 = pneg %p97
        %p373 = pneg %p94
        %p374 = pneg %p118
        %p375 = pneg %p115
        %p376 = pneg %p139
        %p377 = pneg %p136
        %p378 = pneg %p160
        %p379 = pneg %p157
        %p380 = pneg %p181
        %p381 = pneg %p178
        %p382 = pneg %p202
        %p383 = pneg %p199
        %p384 = pneg %p223
        %p385 = pneg %p220
        %p386 = pneg %p251
        %p387 = pneg %p248
        %s388 = sand.u32 %s238, 1
        %s389 = scalar_lea.sflag [#allocation5], %s388
        %s390 = sand.u32 %s238, 1
        %s391 = smul.addr %s390, 8
        %s392 = scalar_lea.vmem [#allocation8], %s391
        %s393 = sadd.s32 %s33, 1
        %p394 = scmp.lt.s32.totalorder %s393, 2
        %s395 = scalar_select %p394, %s393, 2
        %v396 = vld [vmem:[%s344] sm:$0xff]
        %397 = vst [vmem:[#allocation2] sm:$0xff] %v396
        %v398 = vld [vmem:[%s354] sm:$0xff]
        %399 = vst [vmem:[#allocation2 + $0x8] sm:$0xff] %v398
        %v400 = vld [vmem:[#allocation2] sm:$0xff]
        %v401 = vld [vmem:[%s2] sm:$0xff]
        %403 = vset.pattern.permute.xlu0 0
        %404 = vperm.xlu0 %403, %v401
        %v405 = vpop.permute.xlu0 %404
        %v407 = vmul.f32 %v400, %v405
        %v408 = vld [vmem:[#allocation2] sm:$0xff]
        %v409 = vld [vmem:[#allocation2 + $0x8] sm:$0xff]
        %410 = vset.pattern.permute.xlu0 1
        %411 = vperm.xlu0 %410, %v401
        %v412 = vpop.permute.xlu0 %411
        %v414 = vmul.f32 %v408, %v412
        %v415 = vmul.f32 %v409, %v412
        %418 = vrot.lane.b32.xlu0 %v414, 126
        %v419 = vpop.permute.xlu0 %418
        %420 = vrot.lane.b32.xlu0 %v415, 126
        %v421 = vpop.permute.xlu0 %420
        %vm422 = vcmask 1031168
        %v423 = vsel %vm422, %v419, %v421
        %v425 = vadd.f32 %v407, %v423
        %426 = vset.pattern.permute.xlu0 2
        %427 = vperm.xlu0 %426, %v401
        %v428 = vpop.permute.xlu0 %427
        %v430 = vmul.f32 %v408, %v428
        %v431 = vmul.f32 %v409, %v428
        %434 = vrot.lane.b32.xlu0 %v430, 124
        %v435 = vpop.permute.xlu0 %434
        %436 = vrot.lane.b32.xlu0 %v431, 124
        %v437 = vpop.permute.xlu0 %436
        %vm438 = vcmask 1014784
        %v439 = vsel %vm438, %v435, %v437
        %v441 = vadd.f32 %v425, %v439
        %v442 = vld [vmem:[%s3] sm:$0xff]
        %444 = vset.pattern.permute.xlu0 0
        %445 = vperm.xlu0 %444, %v442
        %v446 = vpop.permute.xlu0 %445
        %v448 = vadd.f32 %v441, %v446
        %v449 = vmax.f32 %v448, 0.0
        %v450 = vld [vmem:[%s4] sm:$0xff]
        %452 = vset.pattern.permute.xlu0 0
        %453 = vperm.xlu0 %452, %v450
        %v454 = vpop.permute.xlu0 %453
        %v456 = vperm.slane %v449, 0
        %v457 = vmul.f32 %v454, %v456
        %458 = vset.pattern.permute.xlu0 1
        %459 = vperm.xlu0 %458, %v450
        %v460 = vpop.permute.xlu0 %459
        %v462 = vperm.slane %v449, 1
        %v463 = vmul.f32 %v460, %v462
        %v464 = vadd.f32 %v457, %v463
        %465 = vset.pattern.permute.xlu0 2
        %466 = vperm.xlu0 %465, %v450
        %v467 = vpop.permute.xlu0 %466
        %v469 = vperm.slane %v449, 2
        %v470 = vmul.f32 %v467, %v469
        %v471 = vadd.f32 %v464, %v470
        %472 = vset.pattern.permute.xlu0 3
        %473 = vperm.xlu0 %472, %v450
        %v474 = vpop.permute.xlu0 %473
        %v476 = vperm.slane %v449, 3
        %v477 = vmul.f32 %v474, %v476
        %v478 = vadd.f32 %v471, %v477
        %479 = vset.pattern.permute.xlu0 4
        %480 = vperm.xlu0 %479, %v450
        %v481 = vpop.permute.xlu0 %480
        %v483 = vperm.slane %v449, 4
        %v484 = vmul.f32 %v481, %v483
        %v485 = vadd.f32 %v478, %v484
        %486 = vset.pattern.permute.xlu0 5
        %487 = vperm.xlu0 %486, %v450
        %v488 = vpop.permute.xlu0 %487
        %v490 = vperm.slane %v449, 5
        %v491 = vmul.f32 %v488, %v490
        %v492 = vadd.f32 %v485, %v491
        %493 = vset.pattern.permute.xlu0 6
        %494 = vperm.xlu0 %493, %v450
        %v495 = vpop.permute.xlu0 %494
        %v497 = vperm.slane %v449, 6
        %v498 = vmul.f32 %v495, %v497
        %v499 = vadd.f32 %v492, %v498
        %500 = vset.pattern.permute.xlu0 7
        %501 = vperm.xlu0 %500, %v450
        %v502 = vpop.permute.xlu0 %501
        %v504 = vperm.slane %v449, 7
        %v505 = vmul.f32 %v502, %v504
        %v506 = vadd.f32 %v499, %v505
        %v507 = vld [vmem:[%s5] sm:$0xff]
        %509 = vset.pattern.permute.xlu0 0
        %510 = vperm.xlu0 %509, %v507
        %v511 = vpop.permute.xlu0 %510
        %v513 = vadd.f32 %v506, %v511
        %v514 = vmax.f32 %v513, 0.0
        %v515 = vld [vmem:[%s6] sm:$0xff]
        %517 = vset.pattern.permute.xlu0 0
        %518 = vperm.xlu0 %517, %v515
        %v519 = vpop.permute.xlu0 %518
        %v521 = vperm.slane %v514, 0
        %v522 = vmul.f32 %v519, %v521
        %523 = vset.pattern.permute.xlu0 1
        %524 = vperm.xlu0 %523, %v515
        %v525 = vpop.permute.xlu0 %524
        %v527 = vperm.slane %v514, 1
        %v528 = vmul.f32 %v525, %v527
        %v529 = vadd.f32 %v522, %v528
        %530 = vset.pattern.permute.xlu0 2
        %531 = vperm.xlu0 %530, %v515
        %v532 = vpop.permute.xlu0 %531
        %v534 = vperm.slane %v514, 2
        %v535 = vmul.f32 %v532, %v534
        %v536 = vadd.f32 %v529, %v535
        %537 = vset.pattern.permute.xlu0 3
        %538 = vperm.xlu0 %537, %v515
        %v539 = vpop.permute.xlu0 %538
        %v541 = vperm.slane %v514, 3
        %v542 = vmul.f32 %v539, %v541
        %v543 = vadd.f32 %v536, %v542
        %544 = vset.pattern.permute.xlu0 4
        %545 = vperm.xlu0 %544, %v515
        %v546 = vpop.permute.xlu0 %545
        %v548 = vperm.slane %v514, 4
        %v549 = vmul.f32 %v546, %v548
        %v550 = vadd.f32 %v543, %v549
        %551 = vset.pattern.permute.xlu0 5
        %552 = vperm.xlu0 %551, %v515
        %v553 = vpop.permute.xlu0 %552
        %v555 = vperm.slane %v514, 5
        %v556 = vmul.f32 %v553, %v555
        %v557 = vadd.f32 %v550, %v556
        %558 = vset.pattern.permute.xlu0 6
        %559 = vperm.xlu0 %558, %v515
        %v560 = vpop.permute.xlu0 %559
        %v562 = vperm.slane %v514, 6
        %v563 = vmul.f32 %v560, %v562
        %v564 = vadd.f32 %v557, %v563
        %565 = vset.pattern.permute.xlu0 7
        %566 = vperm.xlu0 %565, %v515
        %v567 = vpop.permute.xlu0 %566
        %v569 = vperm.slane %v514, 7
        %v570 = vmul.f32 %v567, %v569
        %v571 = vadd.f32 %v564, %v570
        %v572 = vld [vmem:[%s7] sm:$0xff]
        %574 = vset.pattern.permute.xlu0 0
        %575 = vperm.xlu0 %574, %v572
        %v576 = vpop.permute.xlu0 %575
        %v578 = vadd.f32 %v571, %v576
        %581 = vrot.lane.b32.xlu0 %v408, 124
        %v582 = vpop.permute.xlu0 %581
        %583 = vrot.lane.b32.xlu0 %v409, 124
        %v584 = vpop.permute.xlu0 %583
        %v585 = vsel %vm438, %v582, %v584
        %v587 = vadd.f32 %v578, %v585
        %v588 = vmax.f32 %v587, 0.0
        %589 = vst [vmem:[%s392] sm:$0xff] %v588
        %s590 = sand.u32 %s238, 1
        %s591 = scalar_lea.sflag [#allocation5], %s590
        %s592 = sand.u32 %s238, 1
        %s593 = smul.addr %s592, 8
        %s594 = scalar_lea.vmem [#allocation8], %s593
        // Predicated region
        $region61: #{tpu_custom_call.1} parent=51 // pred_check
          %p595 = pneg %p248
        $region62: #{tpu_custom_call.1} parent=51 // pred_check_branch
          %597 = sbr.rel (%p595) target = $region64
        $region63: #{tpu_custom_call.1} parent=51 // pred_region
          %599 = vsyncadd %s591, 0
          %s600 = smul.addr %s32, 3
          %s601 = sadd.s32 %s33, %s600
          %s602 = smul.addr %s601, 8
          %s603 = scalar_lea.hbm %s8, %s602
          %s605 = sshll.u32 %s594, 4
          %s606 = int_to_ptr.vmem [resolvable:$true] %s605
          %s607 = sshll.u32 %s603, 4
          %s608 = int_to_ptr.hbm [resolvable:$true] %s607
          %610 = dma.vmem_to_hbm [thread:$0]  %s606, 128, %s608, %s591
        $region64: #{tpu_custom_call.1} parent=51 // pred_fallthru
          _
      $region52: #{tpu_custom_call.1} parent=5 // pred_fallthru
        _
      %p611 = scmp.le.s32.totalorder 2, %s23
      // Predicated region
      $region65: #{tpu_custom_call.1} parent=5 // pred_check
        %p612 = pneg %p611
      $region66: #{tpu_custom_call.1} parent=5 // pred_check_branch
        %614 = sbr.rel (%p612) target = $region68
      $region67: #{tpu_custom_call.1} parent=5 // pred_region
        %s615 = ssub.s32 %s23, 2
        // Predicated region
        $region69: #{tpu_custom_call.1} parent=67 // pred_check
          %p616 = pneg %p254
        $region70: #{tpu_custom_call.1} parent=67 // pred_check_branch
          %618 = sbr.rel (%p616) target = $region72
        $region71: #{tpu_custom_call.1} parent=67 // pred_region
          %s619 = sand.u32 %s239, 1
          %s620 = scalar_lea.sflag [#allocation5], %s619
          %s621 = sand.u32 %s239, 1
          %s622 = smul.addr %s621, 8
          %s623 = scalar_lea.vmem [#allocation8], %s622
          %625 = dma.done %s620, 128
        $region72: #{tpu_custom_call.1} parent=67 // pred_fallthru
          _
      $region68: #{tpu_custom_call.1} parent=5 // pred_fallthru
        _
    $region6: #{tpu_custom_call.1} parent=1 // loop_footer
      %s27 = sadd.s32 1, %s23
    $region7: #{tpu_custom_call.1} parent=1 // loop_footer_branch
      %22 = sbr.rel target = $region3
    $region8: #{tpu_custom_call.1} parent=1 // loop_exit
      _
    %626 = vsyncpa [#allocation4], 1
    %s627 = scalar_lea.sflag [#allocation4], 1
    %628 = vsyncpa %s627, 1
    %629 = vsyncpa [#allocation7], 1
    %s630 = scalar_lea.sflag [#allocation7], 1
    %631 = vsyncpa %s630, 1
    %632 = vsyncpa [#allocation5], 1
    %s633 = scalar_lea.sflag [#allocation5], 1
    %634 = vsyncpa %s633, 1

</llo_original>
